<compile_context>
chip_gen: v7x
topology: tpu7x:2x2x1
jax: 0.10.0
libtpu: 0.0.40
codegen_flags: <defaults>
</compile_context>

<pallas_src>
import functools

import jax
import jax.numpy as jnp
from jax.experimental import pallas as pl
from jax.experimental.pallas import tpu as pltpu


def gap_flatten_kernel(f_ref, out_ref, *, inv_hw):
    """Global average pool over the spatial axis for one (batch, channel) tile.

    f_ref  : [bb, HW, tc]  tile of the pre-avgpool feature map (f32 or bf16)
    out_ref: [bb, tc]      pooled (and implicitly flattened) features
    """
    # Fuse the (possible bf16 -> f32) widen into the reduction: no full-tile
    # f32 temporary is materialized, accumulation is f32 regardless of input
    # dtype, and the 1/HW mean scale is applied once on the reduced sum.
    s = jnp.sum(f_ref[...], axis=1, dtype=jnp.float32)  # [bb, tc]
    out_ref[...] = (s * inv_hw).astype(out_ref.dtype)


def _tensorcores_per_chip():
    """Best-effort detection of multi-TensorCore chips (v7x)."""
    try:
        kind = jax.devices()[0].device_kind.lower()
    except Exception:  # pragma: no cover - defensive; default to 1 TC
        return 1
    return 2 if ("v7" in kind or "7x" in kind) else 1


def feature_extractor_head(feat_nhwc, *, bb=None, tc=None, out_dtype=jnp.float32):
    """Pallas implementation of AdaptiveAvgPool2d(1) + flatten.

    feat_nhwc: [B, H, W, C] pre-avgpool backbone feature map in NHWC
               (C == 2048 for resnet50).  bf16 recommended for inference.
    bb:        batch tile (defaults: B for tiny batches, else 8 -> sublane-full
               output stores and bounded VMEM).
    tc:        channel tile (defaults: C on single-TC chips; C//2 on v7x when
               the batch axis alone cannot feed both TensorCores).
    returns:   [B, C] pooled features (flatten is a no-op: pooled spatial
               extent is 1x1).
    """
    B, H, W, C = feat_nhwc.shape
    HW = H * W

    # ---- batch tile -------------------------------------------------------
    if bb is None:
        bb = B if (B <= 8 or B % 8 != 0) else 8
    assert B % bb == 0, "batch dim must be divisible by the batch tile"
    assert bb == B or bb % 8 == 0, "batch tile must be 8-aligned (or the full batch)"
    n_batch_tiles = B // bb

    # ---- channel tile ------------------------------------------------------
    if tc is None:
        tc = C
        # v7x: split the independent channel axis across the two TensorCores
        # when the batch axis can't feed both.  Keep tc >= 512 so per-row
        # strided DMA chunks stay >= 1-2 KiB.
        if (_tensorcores_per_chip() >= 2 and n_batch_tiles < 2
                and C % 256 == 0 and C // 2 >= 512):
            tc = C // 2
    assert C % tc == 0, "channel dim must be divisible by the channel tile"
    assert tc == C or tc % 128 == 0, "channel tile must be lane aligned"

    # C maps to the lane axis (last), HW to the sublane axis.
    f = feat_nhwc.reshape(B, HW, C)
    kernel = functools.partial(gap_flatten_kernel, inv_hw=1.0 / HW)

    # Advisory cost: B*HW*C adds; bytes = feature-map read + pooled write.
    cost = pl.CostEstimate(
        flops=B * HW * C,
        transcendentals=0,
        bytes_accessed=B * HW * C * f.dtype.itemsize
        + B * C * jnp.dtype(out_dtype).itemsize,
    )

    return pl.pallas_call(
        kernel,
        out_shape=jax.ShapeDtypeStruct((B, C), out_dtype),
        grid_spec=pltpu.PrefetchScalarGridSpec(
            num_scalar_prefetch=0,
            grid=(n_batch_tiles, C // tc),
            in_specs=[pl.BlockSpec((bb, HW, tc), lambda b, k: (b, 0, k))],
            out_specs=pl.BlockSpec((bb, tc), lambda b, k: (b, k)),
        ),
        compiler_params=pltpu.CompilerParams(
            # Batch tiles and channel tiles are fully independent.
            dimension_semantics=("parallel", "parallel"),
        ),
        cost_estimate=cost,
    )(f)


def reference(feat_nhwc):
    return jnp.mean(feat_nhwc.astype(jnp.float32), axis=(1, 2))


if __name__ == "__main__":
    # Shapes implied by the module: resnet50 -> num_features = 2048; the
    # pre-avgpool spatial map for a 224x224 input is 7x7.
    B, H, W, C = 2, 7, 7, 2048

    key = jax.random.PRNGKey(0)
    k0, k1 = jax.random.split(key)
    feat_f32 = jax.random.normal(k0, (B, H, W, C), dtype=jnp.float32)

    # f32 path.
    out = jax.block_until_ready(feature_extractor_head(feat_f32))
    ref = jax.block_until_ready(reference(feat_f32))
    assert out.shape == (B, C), out.shape
    assert jnp.allclose(out, ref, atol=1e-4, rtol=1e-4), "f32 mismatch"

    # bf16 feature map (preferred inference path: halved HBM read, f32 accum).
    feat_bf16 = feat_f32.astype(jnp.bfloat16)
    out_bf16 = jax.block_until_ready(feature_extractor_head(feat_bf16))
    ref_bf16 = jax.block_until_ready(reference(feat_bf16))
    assert jnp.allclose(out_bf16, ref_bf16, atol=2e-2, rtol=2e-2), "bf16 mismatch"

    # Larger batch exercising the batch grid axis (bb = 8, parallel tiles).
    B_big = 16
    feat_big = jax.random.normal(k1, (B_big, H, W, C), dtype=jnp.bfloat16)
    out_big = jax.block_until_ready(feature_extractor_head(feat_big))
    ref_big = jax.block_until_ready(reference(feat_big))
    assert out_big.shape == (B_big, C), out_big.shape
    assert jnp.allclose(out_big, ref_big, atol=2e-2, rtol=2e-2), "batched mismatch"

    # Explicit v7x-style channel split: same result.
    out_split = jax.block_until_ready(feature_extractor_head(feat_f32, tc=C // 2))
    assert jnp.allclose(out_split, ref, atol=1e-4, rtol=1e-4), "channel-split mismatch"

    print("KERNEL_OK")
</pallas_src>

<mosaic_0001>
module attributes {stable_mosaic.version = 11 : i64} {
  func.func @gap_flatten_kernel(%arg0: i32, %arg1: i32, %arg2: memref<2x49x2048xf32, #tpu.memory_space<vmem>>, %arg3: memref<2x2048xf32, #tpu.memory_space<vmem>>) attributes {dimension_semantics = [#tpu.dimension_semantics<parallel>, #tpu.dimension_semantics<parallel>], iteration_bounds = array<i64: 1, 1>, scalar_prefetch = 0 : i64, scratch_operands = 0 : i64, tpu.core_type = #tpu.core_type<tc>, window_params = [{transform_indices = @transform_0, window_bounds = array<i64: 2, 49, 2048>}, {transform_indices = @transform_1, window_bounds = array<i64: 2, 2048>}]} {
    %c0 = arith.constant 0 : index
    %c0_0 = arith.constant 0 : index
    %c0_1 = arith.constant 0 : index
    %0 = vector.load %arg2[%c0, %c0_0, %c0_1] : memref<2x49x2048xf32, #tpu.memory_space<vmem>>, vector<2x49x2048xf32>
    %cst = arith.constant dense<0.000000e+00> : vector<2x2048xf32>
    %1 = vector.multi_reduction <add>, %0, %cst [1] : vector<2x49x2048xf32> to vector<2x2048xf32>
    %cst_2 = arith.constant 0.0204081628 : f32
    %2 = vector.broadcast %cst_2 : f32 to vector<2x2048xf32>
    %3 = arith.mulf %1, %2 : vector<2x2048xf32>
    %c0_3 = arith.constant 0 : index
    %c0_4 = arith.constant 0 : index
    %4 = vector.load %arg3[%c0_3, %c0_4] : memref<2x2048xf32, #tpu.memory_space<vmem>>, vector<2x2048xf32>
    tpu.vector_store %arg3[%c0_3, %c0_4], %3 {strides = array<i32>} : memref<2x2048xf32, #tpu.memory_space<vmem>>, vector<2x2048xf32>,
    return
  }
  func.func @transform_0(%arg0: i32, %arg1: i32) -> (i32, i32, i32) {
    %c0_i32 = arith.constant 0 : i32
    %c0_i32_0 = arith.constant 0 : i32
    return %arg0, %c0_i32, %arg1 : i32, i32, i32
  }
  func.func @transform_1(%arg0: i32, %arg1: i32) -> (i32, i32) {
    %c0_i32 = arith.constant 0 : i32
    return %arg0, %arg1 : i32, i32
  }
}

</mosaic_0001>

<llo_original>
// kernel: tpu_custom_call.1
$region0: #{tpu_custom_call.1}
  #allocation0 [shape = 'u32[]', space=smem, size = 0x4, offset = 0x4, fixed_abs, tag = 'smem constant byte address 0x4 - core index']
  #allocation1 [shape = 'u32[144,128]{1,0:T(1,128)}', space=vmem, size = 0x12000, scoped, tag = 'internal scratch']
  %s0 = inlined_call_operand.vmem [shape: f32[2,49,2048], index: 0, kind: input, shape index: {}]
  %s1 = inlined_call_operand.hbm [shape: f32[2,2048], index: 1, kind: output, shape index: {}]
  %s2 = sld [smem:[#allocation0]]
  $region14: #{tpu_custom_call.1} parent=0
    _
  %s4 = ssub.s32 1, %s2
  %s5 = scalar_select 0, %s4, %s2
  $region1: #{tpu_custom_call.1} parent=0
    #allocation2 [shape = 'u8[16384]{0}', space=vmem, size = 0x4000, scoped, tag = 'output window, operand 0, single buffered']
    #allocation3 [shape = 's32[1]{0}', space=sflag, size = 0x4, scoped, tag = 'scoped memory for tpu_custom_call.1']
    %6 = vsyncpa [#allocation3], 0
    // Predicated region
    $region2: #{tpu_custom_call.1} parent=1 // pred_check
      _
    $region3: #{tpu_custom_call.1} parent=1 // pred_check_branch
      %8 = sbr.rel (0) target = $region5
    $region4: #{tpu_custom_call.1} parent=1 // pred_region
      _
    $region5: #{tpu_custom_call.1} parent=1 // pred_fallthru
      _
    %v9 = vld [vmem:[%s0] sm:$0xff]
    %v10 = vld [vmem:[%s0 + $0x8] sm:$0xff]
    %v11 = vld [vmem:[%s0 + $0x10] sm:$0xff]
    %v12 = vld [vmem:[%s0 + $0x18] sm:$0xff]
    %v13 = vld [vmem:[%s0 + $0x20] sm:$0xff]
    %v14 = vld [vmem:[%s0 + $0x28] sm:$0xff]
    %v15 = vld [vmem:[%s0 + $0x30] sm:$0xff]
    %v16 = vld [vmem:[%s0 + $0x38] sm:$0xff]
    %v17 = vld [vmem:[%s0 + $0x40] sm:$0xff]
    %v18 = vld [vmem:[%s0 + $0x48] sm:$0xff]
    %v19 = vld [vmem:[%s0 + $0x50] sm:$0xff]
    %v20 = vld [vmem:[%s0 + $0x58] sm:$0xff]
    %v21 = vld [vmem:[%s0 + $0x60] sm:$0xff]
    %v22 = vld [vmem:[%s0 + $0x68] sm:$0xff]
    %v23 = vld [vmem:[%s0 + $0x70] sm:$0xff]
    %v24 = vld [vmem:[%s0 + $0x78] sm:$0xff]
    %v25 = vld [vmem:[%s0 + $0x80] sm:$0xff]
    %v26 = vld [vmem:[%s0 + $0x88] sm:$0xff]
    %v27 = vld [vmem:[%s0 + $0x90] sm:$0xff]
    %v28 = vld [vmem:[%s0 + $0x98] sm:$0xff]
    %v29 = vld [vmem:[%s0 + $0xa0] sm:$0xff]
    %v30 = vld [vmem:[%s0 + $0xa8] sm:$0xff]
    %v31 = vld [vmem:[%s0 + $0xb0] sm:$0xff]
    %v32 = vld [vmem:[%s0 + $0xb8] sm:$0xff]
    %v33 = vld [vmem:[%s0 + $0xc0] sm:$0xff]
    %v34 = vld [vmem:[%s0 + $0xc8] sm:$0xff]
    %v35 = vld [vmem:[%s0 + $0xd0] sm:$0xff]
    %v36 = vld [vmem:[%s0 + $0xd8] sm:$0xff]
    %v37 = vld [vmem:[%s0 + $0xe0] sm:$0xff]
    %v38 = vld [vmem:[%s0 + $0xe8] sm:$0xff]
    %v39 = vld [vmem:[%s0 + $0xf0] sm:$0xff]
    %v40 = vld [vmem:[%s0 + $0xf8] sm:$0xff]
    %v41 = vld [vmem:[%s0 + $0x100] sm:$0xff]
    %v42 = vld [vmem:[%s0 + $0x108] sm:$0xff]
    %v43 = vld [vmem:[%s0 + $0x110] sm:$0xff]
    %v44 = vld [vmem:[%s0 + $0x118] sm:$0xff]
    %v45 = vld [vmem:[%s0 + $0x120] sm:$0xff]
    %v46 = vld [vmem:[%s0 + $0x128] sm:$0xff]
    %v47 = vld [vmem:[%s0 + $0x130] sm:$0xff]
    %v48 = vld [vmem:[%s0 + $0x138] sm:$0xff]
    %v49 = vld [vmem:[%s0 + $0x140] sm:$0xff]
    %v50 = vld [vmem:[%s0 + $0x148] sm:$0xff]
    %v51 = vld [vmem:[%s0 + $0x150] sm:$0xff]
    %v52 = vld [vmem:[%s0 + $0x158] sm:$0xff]
    %v53 = vld [vmem:[%s0 + $0x160] sm:$0xff]
    %v54 = vld [vmem:[%s0 + $0x168] sm:$0xff]
    %v55 = vld [vmem:[%s0 + $0x170] sm:$0xff]
    %v56 = vld [vmem:[%s0 + $0x178] sm:$0xff]
    %v57 = vld [vmem:[%s0 + $0x180] sm:$0xff]
    %v58 = vld [vmem:[%s0 + $0x188] sm:$0xff]
    %v59 = vld [vmem:[%s0 + $0x190] sm:$0xff]
    %v60 = vld [vmem:[%s0 + $0x198] sm:$0xff]
    %v61 = vld [vmem:[%s0 + $0x1a0] sm:$0xff]
    %v62 = vld [vmem:[%s0 + $0x1a8] sm:$0xff]
    %v63 = vld [vmem:[%s0 + $0x1b0] sm:$0xff]
    %v64 = vld [vmem:[%s0 + $0x1b8] sm:$0xff]
    %v65 = vld [vmem:[%s0 + $0x1c0] sm:$0xff]
    %v66 = vld [vmem:[%s0 + $0x1c8] sm:$0xff]
    %v67 = vld [vmem:[%s0 + $0x1d0] sm:$0xff]
    %v68 = vld [vmem:[%s0 + $0x1d8] sm:$0xff]
    %v69 = vld [vmem:[%s0 + $0x1e0] sm:$0xff]
    %v70 = vld [vmem:[%s0 + $0x1e8] sm:$0xff]
    %v71 = vld [vmem:[%s0 + $0x1f0] sm:$0xff]
    %v72 = vld [vmem:[%s0 + $0x1f8] sm:$0xff]
    %v73 = vld [vmem:[%s0 + $0x200] sm:$0xff]
    %v74 = vld [vmem:[%s0 + $0x208] sm:$0xff]
    %v75 = vld [vmem:[%s0 + $0x210] sm:$0xff]
    %v76 = vld [vmem:[%s0 + $0x218] sm:$0xff]
    %v77 = vld [vmem:[%s0 + $0x220] sm:$0xff]
    %v78 = vld [vmem:[%s0 + $0x228] sm:$0xff]
    %v79 = vld [vmem:[%s0 + $0x230] sm:$0xff]
    %v80 = vld [vmem:[%s0 + $0x238] sm:$0xff]
    %v81 = vld [vmem:[%s0 + $0x240] sm:$0xff]
    %v82 = vld [vmem:[%s0 + $0x248] sm:$0xff]
    %v83 = vld [vmem:[%s0 + $0x250] sm:$0xff]
    %v84 = vld [vmem:[%s0 + $0x258] sm:$0xff]
    %v85 = vld [vmem:[%s0 + $0x260] sm:$0xff]
    %v86 = vld [vmem:[%s0 + $0x268] sm:$0xff]
    %v87 = vld [vmem:[%s0 + $0x270] sm:$0xff]
    %v88 = vld [vmem:[%s0 + $0x278] sm:$0xff]
    %v89 = vld [vmem:[%s0 + $0x280] sm:$0xff]
    %v90 = vld [vmem:[%s0 + $0x288] sm:$0xff]
    %v91 = vld [vmem:[%s0 + $0x290] sm:$0xff]
    %v92 = vld [vmem:[%s0 + $0x298] sm:$0xff]
    %v93 = vld [vmem:[%s0 + $0x2a0] sm:$0xff]
    %v94 = vld [vmem:[%s0 + $0x2a8] sm:$0xff]
    %v95 = vld [vmem:[%s0 + $0x2b0] sm:$0xff]
    %v96 = vld [vmem:[%s0 + $0x2b8] sm:$0xff]
    %v97 = vld [vmem:[%s0 + $0x2c0] sm:$0xff]
    %v98 = vld [vmem:[%s0 + $0x2c8] sm:$0xff]
    %v99 = vld [vmem:[%s0 + $0x2d0] sm:$0xff]
    %v100 = vld [vmem:[%s0 + $0x2d8] sm:$0xff]
    %v101 = vld [vmem:[%s0 + $0x2e0] sm:$0xff]
    %v102 = vld [vmem:[%s0 + $0x2e8] sm:$0xff]
    %v103 = vld [vmem:[%s0 + $0x2f0] sm:$0xff]
    %v104 = vld [vmem:[%s0 + $0x2f8] sm:$0xff]
    %v105 = vld [vmem:[%s0 + $0x300] sm:$0x1]
    %v106 = vld [vmem:[%s0 + $0x308] sm:$0x1]
    %v107 = vld [vmem:[%s0 + $0x310] sm:$0x1]
    %v108 = vld [vmem:[%s0 + $0x318] sm:$0x1]
    %v109 = vld [vmem:[%s0 + $0x320] sm:$0x1]
    %v110 = vld [vmem:[%s0 + $0x328] sm:$0x1]
    %v111 = vld [vmem:[%s0 + $0x330] sm:$0x1]
    %v112 = vld [vmem:[%s0 + $0x338] sm:$0x1]
    %v113 = vld [vmem:[%s0 + $0x340] sm:$0x1]
    %v114 = vld [vmem:[%s0 + $0x348] sm:$0x1]
    %v115 = vld [vmem:[%s0 + $0x350] sm:$0x1]
    %v116 = vld [vmem:[%s0 + $0x358] sm:$0x1]
    %v117 = vld [vmem:[%s0 + $0x360] sm:$0x1]
    %v118 = vld [vmem:[%s0 + $0x368] sm:$0x1]
    %v119 = vld [vmem:[%s0 + $0x370] sm:$0x1]
    %v120 = vld [vmem:[%s0 + $0x378] sm:$0x1]
    %v121 = vld [vmem:[%s0 + $0x380] sm:$0xff]
    %v122 = vld [vmem:[%s0 + $0x388] sm:$0xff]
    %v123 = vld [vmem:[%s0 + $0x390] sm:$0xff]
    %v124 = vld [vmem:[%s0 + $0x398] sm:$0xff]
    %v125 = vld [vmem:[%s0 + $0x3a0] sm:$0xff]
    %v126 = vld [vmem:[%s0 + $0x3a8] sm:$0xff]
    %v127 = vld [vmem:[%s0 + $0x3b0] sm:$0xff]
    %v128 = vld [vmem:[%s0 + $0x3b8] sm:$0xff]
    %v129 = vld [vmem:[%s0 + $0x3c0] sm:$0xff]
    %v130 = vld [vmem:[%s0 + $0x3c8] sm:$0xff]
    %v131 = vld [vmem:[%s0 + $0x3d0] sm:$0xff]
    %v132 = vld [vmem:[%s0 + $0x3d8] sm:$0xff]
    %v133 = vld [vmem:[%s0 + $0x3e0] sm:$0xff]
    %v134 = vld [vmem:[%s0 + $0x3e8] sm:$0xff]
    %v135 = vld [vmem:[%s0 + $0x3f0] sm:$0xff]
    %v136 = vld [vmem:[%s0 + $0x3f8] sm:$0xff]
    %v137 = vld [vmem:[%s0 + $0x400] sm:$0xff]
    %v138 = vld [vmem:[%s0 + $0x408] sm:$0xff]
    %v139 = vld [vmem:[%s0 + $0x410] sm:$0xff]
    %v140 = vld [vmem:[%s0 + $0x418] sm:$0xff]
    %v141 = vld [vmem:[%s0 + $0x420] sm:$0xff]
    %v142 = vld [vmem:[%s0 + $0x428] sm:$0xff]
    %v143 = vld [vmem:[%s0 + $0x430] sm:$0xff]
    %v144 = vld [vmem:[%s0 + $0x438] sm:$0xff]
    %v145 = vld [vmem:[%s0 + $0x440] sm:$0xff]
    %v146 = vld [vmem:[%s0 + $0x448] sm:$0xff]
    %v147 = vld [vmem:[%s0 + $0x450] sm:$0xff]
    %v148 = vld [vmem:[%s0 + $0x458] sm:$0xff]
    %v149 = vld [vmem:[%s0 + $0x460] sm:$0xff]
    %v150 = vld [vmem:[%s0 + $0x468] sm:$0xff]
    %v151 = vld [vmem:[%s0 + $0x470] sm:$0xff]
    %v152 = vld [vmem:[%s0 + $0x478] sm:$0xff]
    %v153 = vld [vmem:[%s0 + $0x480] sm:$0xff]
    %v154 = vld [vmem:[%s0 + $0x488] sm:$0xff]
    %v155 = vld [vmem:[%s0 + $0x490] sm:$0xff]
    %v156 = vld [vmem:[%s0 + $0x498] sm:$0xff]
    %v157 = vld [vmem:[%s0 + $0x4a0] sm:$0xff]
    %v158 = vld [vmem:[%s0 + $0x4a8] sm:$0xff]
    %v159 = vld [vmem:[%s0 + $0x4b0] sm:$0xff]
    %v160 = vld [vmem:[%s0 + $0x4b8] sm:$0xff]
    %v161 = vld [vmem:[%s0 + $0x4c0] sm:$0xff]
    %v162 = vld [vmem:[%s0 + $0x4c8] sm:$0xff]
    %v163 = vld [vmem:[%s0 + $0x4d0] sm:$0xff]
    %v164 = vld [vmem:[%s0 + $0x4d8] sm:$0xff]
    %v165 = vld [vmem:[%s0 + $0x4e0] sm:$0xff]
    %v166 = vld [vmem:[%s0 + $0x4e8] sm:$0xff]
    %v167 = vld [vmem:[%s0 + $0x4f0] sm:$0xff]
    %v168 = vld [vmem:[%s0 + $0x4f8] sm:$0xff]
    %v169 = vld [vmem:[%s0 + $0x500] sm:$0xff]
    %v170 = vld [vmem:[%s0 + $0x508] sm:$0xff]
    %v171 = vld [vmem:[%s0 + $0x510] sm:$0xff]
    %v172 = vld [vmem:[%s0 + $0x518] sm:$0xff]
    %v173 = vld [vmem:[%s0 + $0x520] sm:$0xff]
    %v174 = vld [vmem:[%s0 + $0x528] sm:$0xff]
    %v175 = vld [vmem:[%s0 + $0x530] sm:$0xff]
    %v176 = vld [vmem:[%s0 + $0x538] sm:$0xff]
    %v177 = vld [vmem:[%s0 + $0x540] sm:$0xff]
    %v178 = vld [vmem:[%s0 + $0x548] sm:$0xff]
    %v179 = vld [vmem:[%s0 + $0x550] sm:$0xff]
    %v180 = vld [vmem:[%s0 + $0x558] sm:$0xff]
    %v181 = vld [vmem:[%s0 + $0x560] sm:$0xff]
    %v182 = vld [vmem:[%s0 + $0x568] sm:$0xff]
    %v183 = vld [vmem:[%s0 + $0x570] sm:$0xff]
    %v184 = vld [vmem:[%s0 + $0x578] sm:$0xff]
    %v185 = vld [vmem:[%s0 + $0x580] sm:$0xff]
    %v186 = vld [vmem:[%s0 + $0x588] sm:$0xff]
    %v187 = vld [vmem:[%s0 + $0x590] sm:$0xff]
    %v188 = vld [vmem:[%s0 + $0x598] sm:$0xff]
    %v189 = vld [vmem:[%s0 + $0x5a0] sm:$0xff]
    %v190 = vld [vmem:[%s0 + $0x5a8] sm:$0xff]
    %v191 = vld [vmem:[%s0 + $0x5b0] sm:$0xff]
    %v192 = vld [vmem:[%s0 + $0x5b8] sm:$0xff]
    %v193 = vld [vmem:[%s0 + $0x5c0] sm:$0xff]
    %v194 = vld [vmem:[%s0 + $0x5c8] sm:$0xff]
    %v195 = vld [vmem:[%s0 + $0x5d0] sm:$0xff]
    %v196 = vld [vmem:[%s0 + $0x5d8] sm:$0xff]
    %v197 = vld [vmem:[%s0 + $0x5e0] sm:$0xff]
    %v198 = vld [vmem:[%s0 + $0x5e8] sm:$0xff]
    %v199 = vld [vmem:[%s0 + $0x5f0] sm:$0xff]
    %v200 = vld [vmem:[%s0 + $0x5f8] sm:$0xff]
    %v201 = vld [vmem:[%s0 + $0x600] sm:$0xff]
    %v202 = vld [vmem:[%s0 + $0x608] sm:$0xff]
    %v203 = vld [vmem:[%s0 + $0x610] sm:$0xff]
    %v204 = vld [vmem:[%s0 + $0x618] sm:$0xff]
    %v205 = vld [vmem:[%s0 + $0x620] sm:$0xff]
    %v206 = vld [vmem:[%s0 + $0x628] sm:$0xff]
    %v207 = vld [vmem:[%s0 + $0x630] sm:$0xff]
    %v208 = vld [vmem:[%s0 + $0x638] sm:$0xff]
    %v209 = vld [vmem:[%s0 + $0x640] sm:$0xff]
    %v210 = vld [vmem:[%s0 + $0x648] sm:$0xff]
    %v211 = vld [vmem:[%s0 + $0x650] sm:$0xff]
    %v212 = vld [vmem:[%s0 + $0x658] sm:$0xff]
    %v213 = vld [vmem:[%s0 + $0x660] sm:$0xff]
    %v214 = vld [vmem:[%s0 + $0x668] sm:$0xff]
    %v215 = vld [vmem:[%s0 + $0x670] sm:$0xff]
    %v216 = vld [vmem:[%s0 + $0x678] sm:$0xff]
    %v217 = vld [vmem:[%s0 + $0x680] sm:$0x1]
    %v218 = vld [vmem:[%s0 + $0x688] sm:$0x1]
    %v219 = vld [vmem:[%s0 + $0x690] sm:$0x1]
    %v220 = vld [vmem:[%s0 + $0x698] sm:$0x1]
    %v221 = vld [vmem:[%s0 + $0x6a0] sm:$0x1]
    %v222 = vld [vmem:[%s0 + $0x6a8] sm:$0x1]
    %v223 = vld [vmem:[%s0 + $0x6b0] sm:$0x1]
    %v224 = vld [vmem:[%s0 + $0x6b8] sm:$0x1]
    %v225 = vld [vmem:[%s0 + $0x6c0] sm:$0x1]
    %v226 = vld [vmem:[%s0 + $0x6c8] sm:$0x1]
    %v227 = vld [vmem:[%s0 + $0x6d0] sm:$0x1]
    %v228 = vld [vmem:[%s0 + $0x6d8] sm:$0x1]
    %v229 = vld [vmem:[%s0 + $0x6e0] sm:$0x1]
    %v230 = vld [vmem:[%s0 + $0x6e8] sm:$0x1]
    %v231 = vld [vmem:[%s0 + $0x6f0] sm:$0x1]
    %v232 = vld [vmem:[%s0 + $0x6f8] sm:$0x1]
    %v233 = vadd.f32 %v9, %v25
    %v234 = vadd.f32 %v233, %v41
    %v235 = vadd.f32 %v234, %v57
    %v236 = vadd.f32 %v235, %v73
    %v237 = vadd.f32 %v236, %v89
    %vm238 = vcmask 1040384
    %v239 = vsel %vm238, %v105, 0.0
    %v240 = vadd.f32 %v237, %v239
    %v241 = vrot.slane %v240, 4
    %v242 = vadd.f32 %v240, %v241
    %v243 = vrot.slane %v242, 2
    %v244 = vadd.f32 %v242, %v243
    %v245 = vrot.slane %v244, 1
    %v246 = vadd.f32 %v244, %v245
    %v247 = vadd.f32 %v10, %v26
    %v248 = vadd.f32 %v247, %v42
    %v249 = vadd.f32 %v248, %v58
    %v250 = vadd.f32 %v249, %v74
    %v251 = vadd.f32 %v250, %v90
    %v252 = vsel %vm238, %v106, 0.0
    %v253 = vadd.f32 %v251, %v252
    %v254 = vrot.slane %v253, 4
    %v255 = vadd.f32 %v253, %v254
    %v256 = vrot.slane %v255, 2
    %v257 = vadd.f32 %v255, %v256
    %v258 = vrot.slane %v257, 1
    %v259 = vadd.f32 %v257, %v258
    %v260 = vadd.f32 %v11, %v27
    %v261 = vadd.f32 %v260, %v43
    %v262 = vadd.f32 %v261, %v59
    %v263 = vadd.f32 %v262, %v75
    %v264 = vadd.f32 %v263, %v91
    %v265 = vsel %vm238, %v107, 0.0
    %v266 = vadd.f32 %v264, %v265
    %v267 = vrot.slane %v266, 4
    %v268 = vadd.f32 %v266, %v267
    %v269 = vrot.slane %v268, 2
    %v270 = vadd.f32 %v268, %v269
    %v271 = vrot.slane %v270, 1
    %v272 = vadd.f32 %v270, %v271
    %v273 = vadd.f32 %v12, %v28
    %v274 = vadd.f32 %v273, %v44
    %v275 = vadd.f32 %v274, %v60
    %v276 = vadd.f32 %v275, %v76
    %v277 = vadd.f32 %v276, %v92
    %v278 = vsel %vm238, %v108, 0.0
    %v279 = vadd.f32 %v277, %v278
    %v280 = vrot.slane %v279, 4
    %v281 = vadd.f32 %v279, %v280
    %v282 = vrot.slane %v281, 2
    %v283 = vadd.f32 %v281, %v282
    %v284 = vrot.slane %v283, 1
    %v285 = vadd.f32 %v283, %v284
    %v286 = vadd.f32 %v13, %v29
    %v287 = vadd.f32 %v286, %v45
    %v288 = vadd.f32 %v287, %v61
    %v289 = vadd.f32 %v288, %v77
    %v290 = vadd.f32 %v289, %v93
    %v291 = vsel %vm238, %v109, 0.0
    %v292 = vadd.f32 %v290, %v291
    %v293 = vrot.slane %v292, 4
    %v294 = vadd.f32 %v292, %v293
    %v295 = vrot.slane %v294, 2
    %v296 = vadd.f32 %v294, %v295
    %v297 = vrot.slane %v296, 1
    %v298 = vadd.f32 %v296, %v297
    %v299 = vadd.f32 %v14, %v30
    %v300 = vadd.f32 %v299, %v46
    %v301 = vadd.f32 %v300, %v62
    %v302 = vadd.f32 %v301, %v78
    %v303 = vadd.f32 %v302, %v94
    %v304 = vsel %vm238, %v110, 0.0
    %v305 = vadd.f32 %v303, %v304
    %v306 = vrot.slane %v305, 4
    %v307 = vadd.f32 %v305, %v306
    %v308 = vrot.slane %v307, 2
    %v309 = vadd.f32 %v307, %v308
    %v310 = vrot.slane %v309, 1
    %v311 = vadd.f32 %v309, %v310
    %v312 = vadd.f32 %v15, %v31
    %v313 = vadd.f32 %v312, %v47
    %v314 = vadd.f32 %v313, %v63
    %v315 = vadd.f32 %v314, %v79
    %v316 = vadd.f32 %v315, %v95
    %v317 = vsel %vm238, %v111, 0.0
    %v318 = vadd.f32 %v316, %v317
    %v319 = vrot.slane %v318, 4
    %v320 = vadd.f32 %v318, %v319
    %v321 = vrot.slane %v320, 2
    %v322 = vadd.f32 %v320, %v321
    %v323 = vrot.slane %v322, 1
    %v324 = vadd.f32 %v322, %v323
    %v325 = vadd.f32 %v16, %v32
    %v326 = vadd.f32 %v325, %v48
    %v327 = vadd.f32 %v326, %v64
    %v328 = vadd.f32 %v327, %v80
    %v329 = vadd.f32 %v328, %v96
    %v330 = vsel %vm238, %v112, 0.0
    %v331 = vadd.f32 %v329, %v330
    %v332 = vrot.slane %v331, 4
    %v333 = vadd.f32 %v331, %v332
    %v334 = vrot.slane %v333, 2
    %v335 = vadd.f32 %v333, %v334
    %v336 = vrot.slane %v335, 1
    %v337 = vadd.f32 %v335, %v336
    %v338 = vadd.f32 %v17, %v33
    %v339 = vadd.f32 %v338, %v49
    %v340 = vadd.f32 %v339, %v65
    %v341 = vadd.f32 %v340, %v81
    %v342 = vadd.f32 %v341, %v97
    %v343 = vsel %vm238, %v113, 0.0
    %v344 = vadd.f32 %v342, %v343
    %v345 = vrot.slane %v344, 4
    %v346 = vadd.f32 %v344, %v345
    %v347 = vrot.slane %v346, 2
    %v348 = vadd.f32 %v346, %v347
    %v349 = vrot.slane %v348, 1
    %v350 = vadd.f32 %v348, %v349
    %v351 = vadd.f32 %v18, %v34
    %v352 = vadd.f32 %v351, %v50
    %v353 = vadd.f32 %v352, %v66
    %v354 = vadd.f32 %v353, %v82
    %v355 = vadd.f32 %v354, %v98
    %v356 = vsel %vm238, %v114, 0.0
    %v357 = vadd.f32 %v355, %v356
    %v358 = vrot.slane %v357, 4
    %v359 = vadd.f32 %v357, %v358
    %v360 = vrot.slane %v359, 2
    %v361 = vadd.f32 %v359, %v360
    %v362 = vrot.slane %v361, 1
    %v363 = vadd.f32 %v361, %v362
    %v364 = vadd.f32 %v19, %v35
    %v365 = vadd.f32 %v364, %v51
    %v366 = vadd.f32 %v365, %v67
    %v367 = vadd.f32 %v366, %v83
    %v368 = vadd.f32 %v367, %v99
    %v369 = vsel %vm238, %v115, 0.0
    %v370 = vadd.f32 %v368, %v369
    %v371 = vrot.slane %v370, 4
    %v372 = vadd.f32 %v370, %v371
    %v373 = vrot.slane %v372, 2
    %v374 = vadd.f32 %v372, %v373
    %v375 = vrot.slane %v374, 1
    %v376 = vadd.f32 %v374, %v375
    %v377 = vadd.f32 %v20, %v36
    %v378 = vadd.f32 %v377, %v52
    %v379 = vadd.f32 %v378, %v68
    %v380 = vadd.f32 %v379, %v84
    %v381 = vadd.f32 %v380, %v100
    %v382 = vsel %vm238, %v116, 0.0
    %v383 = vadd.f32 %v381, %v382
    %v384 = vrot.slane %v383, 4
    %v385 = vadd.f32 %v383, %v384
    %v386 = vrot.slane %v385, 2
    %v387 = vadd.f32 %v385, %v386
    %v388 = vrot.slane %v387, 1
    %v389 = vadd.f32 %v387, %v388
    %v390 = vadd.f32 %v21, %v37
    %v391 = vadd.f32 %v390, %v53
    %v392 = vadd.f32 %v391, %v69
    %v393 = vadd.f32 %v392, %v85
    %v394 = vadd.f32 %v393, %v101
    %v395 = vsel %vm238, %v117, 0.0
    %v396 = vadd.f32 %v394, %v395
    %v397 = vrot.slane %v396, 4
    %v398 = vadd.f32 %v396, %v397
    %v399 = vrot.slane %v398, 2
    %v400 = vadd.f32 %v398, %v399
    %v401 = vrot.slane %v400, 1
    %v402 = vadd.f32 %v400, %v401
    %v403 = vadd.f32 %v22, %v38
    %v404 = vadd.f32 %v403, %v54
    %v405 = vadd.f32 %v404, %v70
    %v406 = vadd.f32 %v405, %v86
    %v407 = vadd.f32 %v406, %v102
    %v408 = vsel %vm238, %v118, 0.0
    %v409 = vadd.f32 %v407, %v408
    %v410 = vrot.slane %v409, 4
    %v411 = vadd.f32 %v409, %v410
    %v412 = vrot.slane %v411, 2
    %v413 = vadd.f32 %v411, %v412
    %v414 = vrot.slane %v413, 1
    %v415 = vadd.f32 %v413, %v414
    %v416 = vadd.f32 %v23, %v39
    %v417 = vadd.f32 %v416, %v55
    %v418 = vadd.f32 %v417, %v71
    %v419 = vadd.f32 %v418, %v87
    %v420 = vadd.f32 %v419, %v103
    %v421 = vsel %vm238, %v119, 0.0
    %v422 = vadd.f32 %v420, %v421
    %v423 = vrot.slane %v422, 4
    %v424 = vadd.f32 %v422, %v423
    %v425 = vrot.slane %v424, 2
    %v426 = vadd.f32 %v424, %v425
    %v427 = vrot.slane %v426, 1
    %v428 = vadd.f32 %v426, %v427
    %v429 = vadd.f32 %v24, %v40
    %v430 = vadd.f32 %v429, %v56
    %v431 = vadd.f32 %v430, %v72
    %v432 = vadd.f32 %v431, %v88
    %v433 = vadd.f32 %v432, %v104
    %v434 = vsel %vm238, %v120, 0.0
    %v435 = vadd.f32 %v433, %v434
    %v436 = vrot.slane %v435, 4
    %v437 = vadd.f32 %v435, %v436
    %v438 = vrot.slane %v437, 2
    %v439 = vadd.f32 %v437, %v438
    %v440 = vrot.slane %v439, 1
    %v441 = vadd.f32 %v439, %v440
    %v442 = vadd.f32 %v121, %v137
    %v443 = vadd.f32 %v442, %v153
    %v444 = vadd.f32 %v443, %v169
    %v445 = vadd.f32 %v444, %v185
    %v446 = vadd.f32 %v445, %v201
    %v447 = vsel %vm238, %v217, 0.0
    %v448 = vadd.f32 %v446, %v447
    %v449 = vrot.slane %v448, 4
    %v450 = vadd.f32 %v448, %v449
    %v451 = vrot.slane %v450, 2
    %v452 = vadd.f32 %v450, %v451
    %v453 = vrot.slane %v452, 1
    %v454 = vadd.f32 %v452, %v453
    %v455 = vadd.f32 %v122, %v138
    %v456 = vadd.f32 %v455, %v154
    %v457 = vadd.f32 %v456, %v170
    %v458 = vadd.f32 %v457, %v186
    %v459 = vadd.f32 %v458, %v202
    %v460 = vsel %vm238, %v218, 0.0
    %v461 = vadd.f32 %v459, %v460
    %v462 = vrot.slane %v461, 4
    %v463 = vadd.f32 %v461, %v462
    %v464 = vrot.slane %v463, 2
    %v465 = vadd.f32 %v463, %v464
    %v466 = vrot.slane %v465, 1
    %v467 = vadd.f32 %v465, %v466
    %v468 = vadd.f32 %v123, %v139
    %v469 = vadd.f32 %v468, %v155
    %v470 = vadd.f32 %v469, %v171
    %v471 = vadd.f32 %v470, %v187
    %v472 = vadd.f32 %v471, %v203
    %v473 = vsel %vm238, %v219, 0.0
    %v474 = vadd.f32 %v472, %v473
    %v475 = vrot.slane %v474, 4
    %v476 = vadd.f32 %v474, %v475
    %v477 = vrot.slane %v476, 2
    %v478 = vadd.f32 %v476, %v477
    %v479 = vrot.slane %v478, 1
    %v480 = vadd.f32 %v478, %v479
    %v481 = vadd.f32 %v124, %v140
    %v482 = vadd.f32 %v481, %v156
    %v483 = vadd.f32 %v482, %v172
    %v484 = vadd.f32 %v483, %v188
    %v485 = vadd.f32 %v484, %v204
    %v486 = vsel %vm238, %v220, 0.0
    %v487 = vadd.f32 %v485, %v486
    %v488 = vrot.slane %v487, 4
    %v489 = vadd.f32 %v487, %v488
    %v490 = vrot.slane %v489, 2
    %v491 = vadd.f32 %v489, %v490
    %v492 = vrot.slane %v491, 1
    %v493 = vadd.f32 %v491, %v492
    %v494 = vadd.f32 %v125, %v141
    %v495 = vadd.f32 %v494, %v157
    %v496 = vadd.f32 %v495, %v173
    %v497 = vadd.f32 %v496, %v189
    %v498 = vadd.f32 %v497, %v205
    %v499 = vsel %vm238, %v221, 0.0
    %v500 = vadd.f32 %v498, %v499
    %v501 = vrot.slane %v500, 4
    %v502 = vadd.f32 %v500, %v501
    %v503 = vrot.slane %v502, 2
    %v504 = vadd.f32 %v502, %v503
    %v505 = vrot.slane %v504, 1
    %v506 = vadd.f32 %v504, %v505
    %v507 = vadd.f32 %v126, %v142
    %v508 = vadd.f32 %v507, %v158
    %v509 = vadd.f32 %v508, %v174
    %v510 = vadd.f32 %v509, %v190
    %v511 = vadd.f32 %v510, %v206
    %v512 = vsel %vm238, %v222, 0.0
    %v513 = vadd.f32 %v511, %v512
    %v514 = vrot.slane %v513, 4
    %v515 = vadd.f32 %v513, %v514
    %v516 = vrot.slane %v515, 2
    %v517 = vadd.f32 %v515, %v516
    %v518 = vrot.slane %v517, 1
    %v519 = vadd.f32 %v517, %v518
    %v520 = vadd.f32 %v127, %v143
    %v521 = vadd.f32 %v520, %v159
    %v522 = vadd.f32 %v521, %v175
    %v523 = vadd.f32 %v522, %v191
    %v524 = vadd.f32 %v523, %v207
    %v525 = vsel %vm238, %v223, 0.0
    %v526 = vadd.f32 %v524, %v525
    %v527 = vrot.slane %v526, 4
    %v528 = vadd.f32 %v526, %v527
    %v529 = vrot.slane %v528, 2
    %v530 = vadd.f32 %v528, %v529
    %v531 = vrot.slane %v530, 1
    %v532 = vadd.f32 %v530, %v531
    %v533 = vadd.f32 %v128, %v144
    %v534 = vadd.f32 %v533, %v160
    %v535 = vadd.f32 %v534, %v176
    %v536 = vadd.f32 %v535, %v192
    %v537 = vadd.f32 %v536, %v208
    %v538 = vsel %vm238, %v224, 0.0
    %v539 = vadd.f32 %v537, %v538
    %v540 = vrot.slane %v539, 4
    %v541 = vadd.f32 %v539, %v540
    %v542 = vrot.slane %v541, 2
    %v543 = vadd.f32 %v541, %v542
    %v544 = vrot.slane %v543, 1
    %v545 = vadd.f32 %v543, %v544
    %v546 = vadd.f32 %v129, %v145
    %v547 = vadd.f32 %v546, %v161
    %v548 = vadd.f32 %v547, %v177
    %v549 = vadd.f32 %v548, %v193
    %v550 = vadd.f32 %v549, %v209
    %v551 = vsel %vm238, %v225, 0.0
    %v552 = vadd.f32 %v550, %v551
    %v553 = vrot.slane %v552, 4
    %v554 = vadd.f32 %v552, %v553
    %v555 = vrot.slane %v554, 2
    %v556 = vadd.f32 %v554, %v555
    %v557 = vrot.slane %v556, 1
    %v558 = vadd.f32 %v556, %v557
    %v559 = vadd.f32 %v130, %v146
    %v560 = vadd.f32 %v559, %v162
    %v561 = vadd.f32 %v560, %v178
    %v562 = vadd.f32 %v561, %v194
    %v563 = vadd.f32 %v562, %v210
    %v564 = vsel %vm238, %v226, 0.0
    %v565 = vadd.f32 %v563, %v564
    %v566 = vrot.slane %v565, 4
    %v567 = vadd.f32 %v565, %v566
    %v568 = vrot.slane %v567, 2
    %v569 = vadd.f32 %v567, %v568
    %v570 = vrot.slane %v569, 1
    %v571 = vadd.f32 %v569, %v570
    %v572 = vadd.f32 %v131, %v147
    %v573 = vadd.f32 %v572, %v163
    %v574 = vadd.f32 %v573, %v179
    %v575 = vadd.f32 %v574, %v195
    %v576 = vadd.f32 %v575, %v211
    %v577 = vsel %vm238, %v227, 0.0
    %v578 = vadd.f32 %v576, %v577
    %v579 = vrot.slane %v578, 4
    %v580 = vadd.f32 %v578, %v579
    %v581 = vrot.slane %v580, 2
    %v582 = vadd.f32 %v580, %v581
    %v583 = vrot.slane %v582, 1
    %v584 = vadd.f32 %v582, %v583
    %v585 = vadd.f32 %v132, %v148
    %v586 = vadd.f32 %v585, %v164
    %v587 = vadd.f32 %v586, %v180
    %v588 = vadd.f32 %v587, %v196
    %v589 = vadd.f32 %v588, %v212
    %v590 = vsel %vm238, %v228, 0.0
    %v591 = vadd.f32 %v589, %v590
    %v592 = vrot.slane %v591, 4
    %v593 = vadd.f32 %v591, %v592
    %v594 = vrot.slane %v593, 2
    %v595 = vadd.f32 %v593, %v594
    %v596 = vrot.slane %v595, 1
    %v597 = vadd.f32 %v595, %v596
    %v598 = vadd.f32 %v133, %v149
    %v599 = vadd.f32 %v598, %v165
    %v600 = vadd.f32 %v599, %v181
    %v601 = vadd.f32 %v600, %v197
    %v602 = vadd.f32 %v601, %v213
    %v603 = vsel %vm238, %v229, 0.0
    %v604 = vadd.f32 %v602, %v603
    %v605 = vrot.slane %v604, 4
    %v606 = vadd.f32 %v604, %v605
    %v607 = vrot.slane %v606, 2
    %v608 = vadd.f32 %v606, %v607
    %v609 = vrot.slane %v608, 1
    %v610 = vadd.f32 %v608, %v609
    %v611 = vadd.f32 %v134, %v150
    %v612 = vadd.f32 %v611, %v166
    %v613 = vadd.f32 %v612, %v182
    %v614 = vadd.f32 %v613, %v198
    %v615 = vadd.f32 %v614, %v214
    %v616 = vsel %vm238, %v230, 0.0
    %v617 = vadd.f32 %v615, %v616
    %v618 = vrot.slane %v617, 4
    %v619 = vadd.f32 %v617, %v618
    %v620 = vrot.slane %v619, 2
    %v621 = vadd.f32 %v619, %v620
    %v622 = vrot.slane %v621, 1
    %v623 = vadd.f32 %v621, %v622
    %v624 = vadd.f32 %v135, %v151
    %v625 = vadd.f32 %v624, %v167
    %v626 = vadd.f32 %v625, %v183
    %v627 = vadd.f32 %v626, %v199
    %v628 = vadd.f32 %v627, %v215
    %v629 = vsel %vm238, %v231, 0.0
    %v630 = vadd.f32 %v628, %v629
    %v631 = vrot.slane %v630, 4
    %v632 = vadd.f32 %v630, %v631
    %v633 = vrot.slane %v632, 2
    %v634 = vadd.f32 %v632, %v633
    %v635 = vrot.slane %v634, 1
    %v636 = vadd.f32 %v634, %v635
    %v637 = vadd.f32 %v136, %v152
    %v638 = vadd.f32 %v637, %v168
    %v639 = vadd.f32 %v638, %v184
    %v640 = vadd.f32 %v639, %v200
    %v641 = vadd.f32 %v640, %v216
    %v642 = vsel %vm238, %v232, 0.0
    %v643 = vadd.f32 %v641, %v642
    %v644 = vrot.slane %v643, 4
    %v645 = vadd.f32 %v643, %v644
    %v646 = vrot.slane %v645, 2
    %v647 = vadd.f32 %v645, %v646
    %v648 = vrot.slane %v647, 1
    %v649 = vadd.f32 %v647, %v648
    %v650 = vmul.f32 %v246, 0.020408163
    %v651 = vmul.f32 %v259, 0.020408163
    %v652 = vmul.f32 %v272, 0.020408163
    %v653 = vmul.f32 %v285, 0.020408163
    %v654 = vmul.f32 %v298, 0.020408163
    %v655 = vmul.f32 %v311, 0.020408163
    %v656 = vmul.f32 %v324, 0.020408163
    %v657 = vmul.f32 %v337, 0.020408163
    %v658 = vmul.f32 %v350, 0.020408163
    %v659 = vmul.f32 %v363, 0.020408163
    %v660 = vmul.f32 %v376, 0.020408163
    %v661 = vmul.f32 %v389, 0.020408163
    %v662 = vmul.f32 %v402, 0.020408163
    %v663 = vmul.f32 %v415, 0.020408163
    %v664 = vmul.f32 %v428, 0.020408163
    %v665 = vmul.f32 %v441, 0.020408163
    %v666 = vmul.f32 %v454, 0.020408163
    %v667 = vmul.f32 %v467, 0.020408163
    %v668 = vmul.f32 %v480, 0.020408163
    %v669 = vmul.f32 %v493, 0.020408163
    %v670 = vmul.f32 %v506, 0.020408163
    %v671 = vmul.f32 %v519, 0.020408163
    %v672 = vmul.f32 %v532, 0.020408163
    %v673 = vmul.f32 %v545, 0.020408163
    %v674 = vmul.f32 %v558, 0.020408163
    %v675 = vmul.f32 %v571, 0.020408163
    %v676 = vmul.f32 %v584, 0.020408163
    %v677 = vmul.f32 %v597, 0.020408163
    %v678 = vmul.f32 %v610, 0.020408163
    %v679 = vmul.f32 %v623, 0.020408163
    %v680 = vmul.f32 %v636, 0.020408163
    %v681 = vmul.f32 %v649, 0.020408163
    %v714 = vcombine.low %v650, %v651
    %v715 = vcombine.low %v652, %v653
    %v717 = vunpack.c.l.s4 1983009808
    %v718 = vunpack.c.0.s8 %v717
    %v719 = vlaneseq
    %v720 = vshrl.u32 %v719, 7
    %v721 = vsub.s32 %v718, %v720
    %v722 = vrot.slane %v714, %v721
    %v724 = vunpack.c.l.s4 1983009808
    %v725 = vunpack.c.0.s8 %v724
    %v726 = vlaneseq
    %v727 = vshrl.u32 %v726, 7
    %v728 = vsub.s32 %v725, %v727
    %v729 = vrot.slane %v715, %v728
    %v730 = vcombine.low %v722, %v729
    %v731 = vcombine.low %v654, %v655
    %v732 = vcombine.low %v656, %v657
    %v734 = vunpack.c.l.s4 1983009808
    %v735 = vunpack.c.0.s8 %v734
    %v736 = vlaneseq
    %v737 = vshrl.u32 %v736, 7
    %v738 = vsub.s32 %v735, %v737
    %v739 = vrot.slane %v731, %v738
    %v741 = vunpack.c.l.s4 1983009808
    %v742 = vunpack.c.0.s8 %v741
    %v743 = vlaneseq
    %v744 = vshrl.u32 %v743, 7
    %v745 = vsub.s32 %v742, %v744
    %v746 = vrot.slane %v732, %v745
    %v747 = vcombine.low %v739, %v746
    %v748 = vcombine.low %v658, %v659
    %v749 = vcombine.low %v660, %v661
    %v751 = vunpack.c.l.s4 1983009808
    %v752 = vunpack.c.0.s8 %v751
    %v753 = vlaneseq
    %v754 = vshrl.u32 %v753, 7
    %v755 = vsub.s32 %v752, %v754
    %v756 = vrot.slane %v748, %v755
    %v758 = vunpack.c.l.s4 1983009808
    %v759 = vunpack.c.0.s8 %v758
    %v760 = vlaneseq
    %v761 = vshrl.u32 %v760, 7
    %v762 = vsub.s32 %v759, %v761
    %v763 = vrot.slane %v749, %v762
    %v764 = vcombine.low %v756, %v763
    %v765 = vcombine.low %v662, %v663
    %v766 = vcombine.low %v664, %v665
    %v768 = vunpack.c.l.s4 1983009808
    %v769 = vunpack.c.0.s8 %v768
    %v770 = vlaneseq
    %v771 = vshrl.u32 %v770, 7
    %v772 = vsub.s32 %v769, %v771
    %v773 = vrot.slane %v765, %v772
    %v775 = vunpack.c.l.s4 1983009808
    %v776 = vunpack.c.0.s8 %v775
    %v777 = vlaneseq
    %v778 = vshrl.u32 %v777, 7
    %v779 = vsub.s32 %v776, %v778
    %v780 = vrot.slane %v766, %v779
    %v781 = vcombine.low %v773, %v780
    %v782 = vcombine.low %v666, %v667
    %v783 = vcombine.low %v668, %v669
    %v785 = vunpack.c.l.s4 1983009808
    %v786 = vunpack.c.0.s8 %v785
    %v787 = vlaneseq
    %v788 = vshrl.u32 %v787, 7
    %v789 = vsub.s32 %v786, %v788
    %v790 = vrot.slane %v782, %v789
    %v792 = vunpack.c.l.s4 1983009808
    %v793 = vunpack.c.0.s8 %v792
    %v794 = vlaneseq
    %v795 = vshrl.u32 %v794, 7
    %v796 = vsub.s32 %v793, %v795
    %v797 = vrot.slane %v783, %v796
    %v798 = vcombine.low %v790, %v797
    %v799 = vcombine.low %v670, %v671
    %v800 = vcombine.low %v672, %v673
    %v802 = vunpack.c.l.s4 1983009808
    %v803 = vunpack.c.0.s8 %v802
    %v804 = vlaneseq
    %v805 = vshrl.u32 %v804, 7
    %v806 = vsub.s32 %v803, %v805
    %v807 = vrot.slane %v799, %v806
    %v809 = vunpack.c.l.s4 1983009808
    %v810 = vunpack.c.0.s8 %v809
    %v811 = vlaneseq
    %v812 = vshrl.u32 %v811, 7
    %v813 = vsub.s32 %v810, %v812
    %v814 = vrot.slane %v800, %v813
    %v815 = vcombine.low %v807, %v814
    %v816 = vcombine.low %v674, %v675
    %v817 = vcombine.low %v676, %v677
    %v819 = vunpack.c.l.s4 1983009808
    %v820 = vunpack.c.0.s8 %v819
    %v821 = vlaneseq
    %v822 = vshrl.u32 %v821, 7
    %v823 = vsub.s32 %v820, %v822
    %v824 = vrot.slane %v816, %v823
    %v826 = vunpack.c.l.s4 1983009808
    %v827 = vunpack.c.0.s8 %v826
    %v828 = vlaneseq
    %v829 = vshrl.u32 %v828, 7
    %v830 = vsub.s32 %v827, %v829
    %v831 = vrot.slane %v817, %v830
    %v832 = vcombine.low %v824, %v831
    %v833 = vcombine.low %v678, %v679
    %v834 = vcombine.low %v680, %v681
    %v836 = vunpack.c.l.s4 1983009808
    %v837 = vunpack.c.0.s8 %v836
    %v838 = vlaneseq
    %v839 = vshrl.u32 %v838, 7
    %v840 = vsub.s32 %v837, %v839
    %v841 = vrot.slane %v833, %v840
    %v843 = vunpack.c.l.s4 1983009808
    %v844 = vunpack.c.0.s8 %v843
    %v845 = vlaneseq
    %v846 = vshrl.u32 %v845, 7
    %v847 = vsub.s32 %v844, %v846
    %v848 = vrot.slane %v834, %v847
    %v849 = vcombine.low %v841, %v848
    %vm850 = vcmask 1044484
    %v851 = vsel %vm850, %v730, %v730
    %vm852 = vcmask 1046534
    %v853 = vsel %vm852, %v730, %v851
    %v854 = vrot.slane %v798, 7
    %vm855 = vcmask 1041409
    %v856 = vsel %vm855, %v854, %v853
    %vm857 = vcmask 1043459
    %v858 = vsel %vm857, %v854, %v856
    %vm859 = vcmask 1045509
    %v860 = vsel %vm859, %v854, %v858
    %vm861 = vcmask 1047559
    %v862 = vsel %vm861, %v854, %v860
    %v863 = vsel %vm850, %v747, %v747
    %v864 = vsel %vm852, %v747, %v863
    %v865 = vrot.slane %v815, 7
    %v866 = vsel %vm855, %v865, %v864
    %v867 = vsel %vm857, %v865, %v866
    %v868 = vsel %vm859, %v865, %v867
    %v869 = vsel %vm861, %v865, %v868
    %v870 = vsel %vm850, %v764, %v764
    %v871 = vsel %vm852, %v764, %v870
    %v872 = vrot.slane %v832, 7
    %v873 = vsel %vm855, %v872, %v871
    %v874 = vsel %vm857, %v872, %v873
    %v875 = vsel %vm859, %v872, %v874
    %v876 = vsel %vm861, %v872, %v875
    %v877 = vsel %vm850, %v781, %v781
    %v878 = vsel %vm852, %v781, %v877
    %v879 = vrot.slane %v849, 7
    %v880 = vsel %vm855, %v879, %v878
    %v881 = vsel %vm857, %v879, %v880
    %v882 = vsel %vm859, %v879, %v881
    %v883 = vsel %vm861, %v879, %v882
    %888 = vst [vmem:[#allocation2] sm:$0xff] %v862
    %889 = vst [vmem:[#allocation2 + $0x8] sm:$0xff] %v869
    %890 = vst [vmem:[#allocation2 + $0x10] sm:$0xff] %v876
    %891 = vst [vmem:[#allocation2 + $0x18] sm:$0xff] %v883
    // Predicated region
    $region6: #{tpu_custom_call.1} parent=1 // pred_check
      _
    $region7: #{tpu_custom_call.1} parent=1 // pred_check_branch
      %893 = sbr.rel (0) target = $region9
    $region8: #{tpu_custom_call.1} parent=1 // pred_region
      %s895 = ssub.s32 512, 512
      %896 = vsyncadd [#allocation3], %s895
      %s898 = sshll.u32 [#allocation2], 4
      %s899 = int_to_ptr.vmem [resolvable:$true] %s898
      %901 = dma.vmem_to_hbm [thread:$0]  %s899, 512, %s1, [#allocation3]
    $region9: #{tpu_custom_call.1} parent=1 // pred_fallthru
      _
    // Predicated region
    $region10: #{tpu_custom_call.1} parent=1 // pred_check
      _
    $region11: #{tpu_custom_call.1} parent=1 // pred_check_branch
      %903 = sbr.rel (0) target = $region13
    $region12: #{tpu_custom_call.1} parent=1 // pred_region
      %904 = dma.done [#allocation3], 512
    $region13: #{tpu_custom_call.1} parent=1 // pred_fallthru
      _
    %905 = vsyncpa [#allocation3], 1

</llo_original>
